<compile_context>
chip_gen: v6e
topology: v6e:2x2x1
jax: 0.10.0
libtpu: 0.0.40
codegen_flags: <defaults>
</compile_context>

<pallas_src>
import functools
import math

import jax
import jax.numpy as jnp
from jax import lax
from jax.experimental import pallas as pl
from jax.experimental.pallas import tpu as pltpu


def _round_up(x, m):
    return ((x + m - 1) // m) * m


def _cdiv(a, b):
    return (a + b - 1) // b


def _tpu_arch():
    """Best-effort (vmem_budget_bytes, num_tensorcores) for the current backend."""
    kind = ""
    try:
        kind = jax.devices()[0].device_kind.lower()
    except Exception:
        pass
    if "v7" in kind:
        # v7x: 64 MiB VMEM per TensorCore, 2 TensorCores per chip.
        return 56 * 1024 * 1024, 2
    if ("v2" in kind) or ("v3" in kind):
        # Old generations with small VMEM; conservative.
        return 12 * 1024 * 1024, 1
    # v5e / v6e / v4 (128 MiB VMEM, 1 TC per Pallas core) and fallback.
    return 100 * 1024 * 1024, 1


def _auto_tiles(M, D, H, x_bytes, w_bytes, out_bytes, acc_in_out,
                vmem_budget, num_cores):
    """Pick (tm, th): prefer the largest row tile (weight reuse is the HBM-roofline
    lever), then the largest hidden tile that still fits the VMEM budget."""

    def vmem_use(tm, th_eff):
        use = 2 * tm * D * x_bytes              # x rows, double-buffered
        use += 2 * tm * D * out_bytes           # output block, double-buffered
        use += 2 * D * th_eff * w_bytes         # W1 slice, double-buffered
        use += 2 * th_eff * D * w_bytes         # W2 slice, double-buffered
        use += tm * D * w_bytes                 # xn scratch (MXU-operand dtype)
        if not acc_in_out:
            use += tm * D * 4                   # separate f32 accumulator scratch
        use += 2 * tm * th_eff * 4              # (tm, th) f32 intermediate + GELU temp
        use += 2 * 1024 * 1024                  # broadcast params / compiler slop
        return use

    tm_cap = _round_up(M, 8)
    if num_cores >= 2 and M > 8:
        # Guarantee >= 2 row tiles so the "parallel" axis shards across both TCs (v7x).
        tm_cap = min(tm_cap, _round_up(_cdiv(M, 2), 8))

    tm_cands = [1024, 512, 256, 128, 64, 32, 16, 8]
    th_cands = [1024, 512, 256, 128]

    for tm in tm_cands:
        tm_eff = min(tm, tm_cap)
        for th in th_cands:
            th_eff = H if th >= H else th
            if vmem_use(tm_eff, th_eff) <= vmem_budget:
                return tm_eff, th
    return min(64, tm_cap), 128


def _ffn_kernel(x_ref, g_ref, b_ref, w1_ref, b1_ref, w2_ref, b2_ref, o_ref,
                *scratch, eps, acc_in_out):
    if acc_in_out:
        (xn_ref,) = scratch
        acc_ref = o_ref                      # f32 output: accumulate in-place
    else:
        xn_ref, acc_ref = scratch

    h_idx = pl.program_id(1)

    # ---- h == 0: LayerNorm once per row tile (centered two-pass variance) and seed
    #      the accumulator with the second Linear's bias (b2 folded into init). ----
    @pl.when(h_idx == 0)
    def _():
        x = x_ref[...].astype(jnp.float32)                       # (tm, D)
        inv_d = 1.0 / x.shape[-1]
        mu = jnp.sum(x, axis=-1, keepdims=True) * inv_d
        xc = x - mu
        var = jnp.sum(xc * xc, axis=-1, keepdims=True) * inv_d
        xn = xc * lax.rsqrt(var + eps)
        xn = xn * g_ref[...].astype(jnp.float32) + b_ref[...].astype(jnp.float32)
        xn_ref[...] = xn.astype(xn_ref.dtype)                    # MXU-operand dtype
        acc_ref[...] = jnp.broadcast_to(
            b2_ref[...].astype(acc_ref.dtype), acc_ref.shape)

    # ---- Linear(dim -> th slice of hidden): native-dtype operands, f32 accumulation ----
    h = jnp.dot(xn_ref[...], w1_ref[...], preferred_element_type=jnp.float32)
    h = h + b1_ref[...].astype(jnp.float32)

    # ---- GELU: exact erf form (torch.nn.GELU default), math stays f32 ----
    h = 0.5 * h * (1.0 + lax.erf(h * 0.7071067811865476))

    # ---- Linear(th slice of hidden -> dim): accumulate in f32 ----
    acc_ref[...] += jnp.dot(h.astype(w2_ref.dtype), w2_ref[...],
                            preferred_element_type=jnp.float32)

    if not acc_in_out:
        # ---- last H tile: write the finished (tm, D) output block ----
        @pl.when(h_idx == pl.num_programs(1) - 1)
        def _():
            o_ref[...] = acc_ref[...].astype(o_ref.dtype)


def feedforward_pallas(x, gamma, beta, w1, b1, w2, b2, *, eps=1e-5,
                       tm=None, th=None, mxu_dtype=None, vmem_limit_bytes=None):
    """Fused LayerNorm -> Linear(D,H) -> GELU -> Linear(H,D).

    x: (B, N, D). gamma/beta: (D,). w1: (D, H), b1: (H,). w2: (H, D), b2: (D,).
    mxu_dtype: optional dtype for streamed weights / MXU operands (pass jnp.bfloat16
    for f32 deployments to halve weight HBM traffic); accumulation is always f32.
    tm/th default to a generation-aware auto configuration.
    """
    B, N, D = x.shape
    H = w1.shape[1]
    M = B * N
    out_dtype = x.dtype

    if mxu_dtype is None:
        mxu_dtype = w1.dtype
    mxu_dtype = jnp.dtype(mxu_dtype)
    w1 = w1.astype(mxu_dtype)
    w2 = w2.astype(mxu_dtype)

    # f32 output: accumulate directly into the resident output block (exact) and skip
    # the separate (tm, D) f32 scratch — frees VMEM on v7x's 64 MiB.
    acc_in_out = (jnp.dtype(out_dtype) == jnp.dtype(jnp.float32))

    vmem_budget, num_cores = _tpu_arch()
    if vmem_limit_bytes is None:
        vmem_limit_bytes = vmem_budget

    x_bytes = jnp.dtype(x.dtype).itemsize
    w_bytes = mxu_dtype.itemsize
    out_bytes = jnp.dtype(out_dtype).itemsize
    auto_tm, auto_th = _auto_tiles(M, D, H, x_bytes, w_bytes, out_bytes,
                                   acc_in_out, int(vmem_limit_bytes), num_cores)
    if tm is None:
        tm = auto_tm
    if th is None:
        th = auto_th

    x2 = x.reshape(M, D)

    # ---- row tiling: clamp, then rebalance tiles so zero-padding is minimal ----
    tm = max(8, min(_round_up(tm, 8), _round_up(M, 8)))
    n_row_tiles = _cdiv(M, tm)
    tm = _round_up(_cdiv(M, n_row_tiles), 8)
    m_pad = _round_up(M, tm)
    if m_pad != M:
        # Zero rows: LayerNorm of a zero row is finite (rsqrt(eps)); sliced off below.
        x2 = jnp.pad(x2, ((0, m_pad - M), (0, 0)))

    # ---- hidden tiling: zero-padding H is exact (padded W1 cols / b1 entries feed
    #      zero rows of W2). Blocks stay lane-aligned (multiple of 128) or full-dim. ----
    if th >= H:
        th = H
    else:
        th = max(128, _round_up(th, 128))
        if th >= H:
            th = H
    h_pad = _round_up(H, th)
    if h_pad != H:
        w1 = jnp.pad(w1, ((0, 0), (0, h_pad - H)))
        b1 = jnp.pad(b1, ((0, h_pad - H),))
        w2 = jnp.pad(w2, ((0, h_pad - H), (0, 0)))

    # 2-D views for broadcast params (TPU wants >= 2-D tiles).
    g2 = gamma.reshape(1, D)
    be2 = beta.reshape(1, D)
    b1_2 = b1.reshape(1, h_pad)
    b2_2 = b2.reshape(1, D)

    grid = (m_pad // tm, h_pad // th)

    scratch_shapes = [pltpu.VMEM((tm, D), mxu_dtype)]      # normalized rows
    if not acc_in_out:
        scratch_shapes.append(pltpu.VMEM((tm, D), jnp.float32))   # f32 accumulator

    out2 = pl.pallas_call(
        functools.partial(_ffn_kernel, eps=eps, acc_in_out=acc_in_out),
        out_shape=jax.ShapeDtypeStruct((m_pad, D), out_dtype),
        grid_spec=pltpu.PrefetchScalarGridSpec(
            num_scalar_prefetch=0,
            grid=grid,
            in_specs=[
                pl.BlockSpec((tm, D), lambda i, h: (i, 0)),     # x rows
                pl.BlockSpec((1, D), lambda i, h: (0, 0)),      # gamma
                pl.BlockSpec((1, D), lambda i, h: (0, 0)),      # beta
                pl.BlockSpec((D, th), lambda i, h: (0, h)),     # W1 slice (in, th)
                pl.BlockSpec((1, th), lambda i, h: (0, h)),     # b1 slice
                pl.BlockSpec((th, D), lambda i, h: (h, 0)),     # W2 slice (th, out)
                pl.BlockSpec((1, D), lambda i, h: (0, 0)),      # b2
            ],
            out_specs=pl.BlockSpec((tm, D), lambda i, h: (i, 0)),
            scratch_shapes=scratch_shapes,
        ),
        compiler_params=pltpu.CompilerParams(
            dimension_semantics=("parallel", "arbitrary"),
            vmem_limit_bytes=int(vmem_limit_bytes),
        ),
    )(x2, g2, be2, w1, b1_2, w2, b2_2)

    if m_pad != M:
        out2 = out2[:M]
    return out2.reshape(B, N, D)


def feedforward_reference(x, gamma, beta, w1, b1, w2, b2, eps=1e-5):
    xf = x.astype(jnp.float32)
    mu = jnp.mean(xf, axis=-1, keepdims=True)
    var = jnp.mean(jnp.square(xf - mu), axis=-1, keepdims=True)
    xn = (xf - mu) * lax.rsqrt(var + eps) * gamma.astype(jnp.float32) \
        + beta.astype(jnp.float32)
    h = xn @ w1.astype(jnp.float32) + b1.astype(jnp.float32)
    h = 0.5 * h * (1.0 + lax.erf(h / math.sqrt(2.0)))
    return (h @ w2.astype(jnp.float32) + b2.astype(jnp.float32)).astype(x.dtype)


def _make_params(key, dim, hidden, dtype):
    kw1, kb1, kw2, kb2 = jax.random.split(key, 4)
    gamma = jnp.ones((dim,), dtype)
    beta = jnp.zeros((dim,), dtype)
    lim1 = 1.0 / math.sqrt(dim)
    w1 = jax.random.uniform(kw1, (dim, hidden), jnp.float32, -lim1, lim1).astype(dtype)
    b1 = jax.random.uniform(kb1, (hidden,), jnp.float32, -lim1, lim1).astype(dtype)
    lim2 = 1.0 / math.sqrt(hidden)
    w2 = jax.random.uniform(kw2, (hidden, dim), jnp.float32, -lim2, lim2).astype(dtype)
    b2 = jax.random.uniform(kb2, (dim,), jnp.float32, -lim2, lim2).astype(dtype)
    return gamma, beta, w1, b1, w2, b2


if __name__ == "__main__":
    key = jax.random.PRNGKey(0)
    k1, k2, k3, k4, k5, k6 = jax.random.split(key, 6)

    # --- Case 1: tiny shapes consistent with the module (auto tiling) ---
    B, N, DIM, HIDDEN = 2, 8, 32, 64
    x = jax.random.normal(k1, (B, N, DIM), dtype=jnp.float32)
    params = _make_params(k2, DIM, HIDDEN, jnp.float32)
    out = jax.block_until_ready(feedforward_pallas(x, *params))
    ref = feedforward_reference(x, *params)
    assert out.shape == (B, N, DIM)
    assert jnp.allclose(out, ref, atol=2e-4, rtol=2e-4), "mismatch vs reference (case 1)"

    # --- Case 2: exercise multi row-tile + H-tiled accumulation (grid = (2, 2)) ---
    B2, N2, DIM2, HIDDEN2 = 2, 64, 128, 256
    x2 = jax.random.normal(k3, (B2, N2, DIM2), dtype=jnp.float32)
    params2 = _make_params(k4, DIM2, HIDDEN2, jnp.float32)
    out2 = jax.block_until_ready(feedforward_pallas(x2, *params2, tm=64, th=128))
    ref2 = feedforward_reference(x2, *params2)
    assert out2.shape == (B2, N2, DIM2)
    assert jnp.allclose(out2, ref2, atol=2e-4, rtol=2e-4), "mismatch vs reference (case 2)"

    # --- Case 3: f32 activations with bf16 MXU operands (weights streamed in bf16) ---
    out3 = jax.block_until_ready(
        feedforward_pallas(x2, *params2, th=128, mxu_dtype=jnp.bfloat16))
    g, be, w1, b1, w2, b2 = params2
    ref3 = feedforward_reference(
        x2, g, be,
        w1.astype(jnp.bfloat16).astype(jnp.float32), b1,
        w2.astype(jnp.bfloat16).astype(jnp.float32), b2)
    assert jnp.allclose(out3, ref3, atol=5e-2, rtol=5e-2), "mismatch vs reference (case 3)"

    # --- Case 4: full bf16 path (exercises the separate f32 accumulator scratch) ---
    x4 = jax.random.normal(k5, (B2, N2, DIM2), dtype=jnp.float32).astype(jnp.bfloat16)
    params4 = _make_params(k6, DIM2, HIDDEN2, jnp.bfloat16)
    out4 = jax.block_until_ready(feedforward_pallas(x4, *params4, th=128))
    ref4 = feedforward_reference(x4, *params4)
    assert out4.dtype == jnp.bfloat16
    assert jnp.allclose(out4.astype(jnp.float32), ref4.astype(jnp.float32),
                        atol=1e-1, rtol=1e-1), "mismatch vs reference (case 4)"

    print("KERNEL_OK")
</pallas_src>

<mosaic_0001>
module attributes {stable_mosaic.version = 11 : i64} {
  func.func @_ffn_kernel(%arg0: i32, %arg1: i32, %arg2: memref<16x32xf32, #tpu.memory_space<vmem>>, %arg3: memref<1x32xf32, #tpu.memory_space<vmem>>, %arg4: memref<1x32xf32, #tpu.memory_space<vmem>>, %arg5: memref<32x64xf32, #tpu.memory_space<vmem>>, %arg6: memref<1x64xf32, #tpu.memory_space<vmem>>, %arg7: memref<64x32xf32, #tpu.memory_space<vmem>>, %arg8: memref<1x32xf32, #tpu.memory_space<vmem>>, %arg9: memref<16x32xf32, #tpu.memory_space<vmem>>, %arg10: memref<16x32xf32, #tpu.memory_space<vmem>>) attributes {dimension_semantics = [#tpu.dimension_semantics<parallel>, #tpu.dimension_semantics<arbitrary>], iteration_bounds = array<i64: 1, 1>, scalar_prefetch = 0 : i64, scratch_operands = 1 : i64, tpu.core_type = #tpu.core_type<tc>, window_params = [{transform_indices = @transform_0, window_bounds = array<i64: 16, 32>}, {pipeline_mode = #tpu.pipeline_mode<synchronous>, transform_indices = @transform_1, window_bounds = array<i64: 1, 32>}, {pipeline_mode = #tpu.pipeline_mode<synchronous>, transform_indices = @transform_2, window_bounds = array<i64: 1, 32>}, {transform_indices = @transform_3, window_bounds = array<i64: 32, 64>}, {transform_indices = @transform_4, window_bounds = array<i64: 1, 64>}, {transform_indices = @transform_5, window_bounds = array<i64: 64, 32>}, {pipeline_mode = #tpu.pipeline_mode<synchronous>, transform_indices = @transform_6, window_bounds = array<i64: 1, 32>}, {transform_indices = @transform_7, window_bounds = array<i64: 16, 32>}]} {
    %c0_i32 = arith.constant 0 : i32
    %0 = arith.cmpi eq, %arg1, %c0_i32 : i32
    %1 = arith.extui %0 : i1 to i32
    %c0_i32_0 = arith.constant 0 : i32
    %2 = arith.cmpi ne, %1, %c0_i32_0 : i32
    scf.if %2 {
      %c0_16 = arith.constant 0 : index
      %c0_17 = arith.constant 0 : index
      %22 = vector.load %arg2[%c0_16, %c0_17] : memref<16x32xf32, #tpu.memory_space<vmem>>, vector<16x32xf32>
      %cst_18 = arith.constant dense<0.000000e+00> : vector<16xf32>
      %23 = vector.multi_reduction <add>, %22, %cst_18 [1] : vector<16x32xf32> to vector<16xf32>
      %24 = vector.shape_cast %23 : vector<16xf32> to vector<16x1xf32>
      %cst_19 = arith.constant 3.125000e-02 : f32
      %25 = vector.broadcast %cst_19 : f32 to vector<16x1xf32>
      %26 = arith.mulf %24, %25 : vector<16x1xf32>
      %27 = vector.broadcast %26 : vector<16x1xf32> to vector<16x32xf32>
      %28 = arith.subf %22, %27 : vector<16x32xf32>
      %29 = arith.mulf %28, %28 : vector<16x32xf32>
      %cst_20 = arith.constant dense<0.000000e+00> : vector<16xf32>
      %30 = vector.multi_reduction <add>, %29, %cst_20 [1] : vector<16x32xf32> to vector<16xf32>
      %31 = vector.shape_cast %30 : vector<16xf32> to vector<16x1xf32>
      %cst_21 = arith.constant 3.125000e-02 : f32
      %32 = vector.broadcast %cst_21 : f32 to vector<16x1xf32>
      %33 = arith.mulf %31, %32 : vector<16x1xf32>
      %cst_22 = arith.constant 9.99999974E-6 : f32
      %34 = vector.broadcast %cst_22 : f32 to vector<16x1xf32>
      %35 = arith.addf %33, %34 : vector<16x1xf32>
      %36 = math.rsqrt %35 : vector<16x1xf32>
      %37 = vector.broadcast %36 : vector<16x1xf32> to vector<16x32xf32>
      %38 = arith.mulf %28, %37 : vector<16x32xf32>
      %c0_23 = arith.constant 0 : index
      %c0_24 = arith.constant 0 : index
      %39 = vector.load %arg3[%c0_23, %c0_24] : memref<1x32xf32, #tpu.memory_space<vmem>>, vector<1x32xf32>
      %40 = vector.broadcast %39 : vector<1x32xf32> to vector<16x32xf32>
      %41 = arith.mulf %38, %40 : vector<16x32xf32>
      %c0_25 = arith.constant 0 : index
      %c0_26 = arith.constant 0 : index
      %42 = vector.load %arg4[%c0_25, %c0_26] : memref<1x32xf32, #tpu.memory_space<vmem>>, vector<1x32xf32>
      %43 = vector.broadcast %42 : vector<1x32xf32> to vector<16x32xf32>
      %44 = arith.addf %41, %43 : vector<16x32xf32>
      %c0_27 = arith.constant 0 : index
      %c0_28 = arith.constant 0 : index
      %45 = vector.load %arg10[%c0_27, %c0_28] : memref<16x32xf32, #tpu.memory_space<vmem>>, vector<16x32xf32>
      tpu.vector_store %arg10[%c0_27, %c0_28], %44 {strides = array<i32>} : memref<16x32xf32, #tpu.memory_space<vmem>>, vector<16x32xf32>,
      %c0_29 = arith.constant 0 : index
      %c0_30 = arith.constant 0 : index
      %46 = vector.load %arg8[%c0_29, %c0_30] : memref<1x32xf32, #tpu.memory_space<vmem>>, vector<1x32xf32>
      %47 = vector.shape_cast %46 : vector<1x32xf32> to vector<1x32xf32>
      %48 = vector.broadcast %47 : vector<1x32xf32> to vector<16x32xf32>
      %c0_31 = arith.constant 0 : index
      %c0_32 = arith.constant 0 : index
      %49 = vector.load %arg9[%c0_31, %c0_32] : memref<16x32xf32, #tpu.memory_space<vmem>>, vector<16x32xf32>
      tpu.vector_store %arg9[%c0_31, %c0_32], %48 {strides = array<i32>} : memref<16x32xf32, #tpu.memory_space<vmem>>, vector<16x32xf32>,
    } else {
    }
    %c0 = arith.constant 0 : index
    %c0_1 = arith.constant 0 : index
    %3 = vector.load %arg10[%c0, %c0_1] : memref<16x32xf32, #tpu.memory_space<vmem>>, vector<16x32xf32>
    %c0_2 = arith.constant 0 : index
    %c0_3 = arith.constant 0 : index
    %4 = vector.load %arg5[%c0_2, %c0_3] : memref<32x64xf32, #tpu.memory_space<vmem>>, vector<32x64xf32>
    %cst = arith.constant dense<0.000000e+00> : vector<16x64xf32>
    %5 = tpu.matmul %3, %4, %cst {dimension_numbers = #tpu.dot_dimension_numbers<[1], [0], [0], [1], [0, 0, 1, 1], [], []>} : vector<16x32xf32>, vector<32x64xf32>, vector<16x64xf32> -> vector<16x64xf32>
    %c0_4 = arith.constant 0 : index
    %c0_5 = arith.constant 0 : index
    %6 = vector.load %arg6[%c0_4, %c0_5] : memref<1x64xf32, #tpu.memory_space<vmem>>, vector<1x64xf32>
    %7 = vector.broadcast %6 : vector<1x64xf32> to vector<16x64xf32>
    %8 = arith.addf %5, %7 : vector<16x64xf32>
    %cst_6 = arith.constant 5.000000e-01 : f32
    %9 = vector.broadcast %cst_6 : f32 to vector<16x64xf32>
    %10 = arith.mulf %9, %8 : vector<16x64xf32>
    %cst_7 = arith.constant 0.707106769 : f32
    %11 = vector.broadcast %cst_7 : f32 to vector<16x64xf32>
    %12 = arith.mulf %8, %11 : vector<16x64xf32>
    %13 = math.erf %12 : vector<16x64xf32>
    %cst_8 = arith.constant 1.000000e+00 : f32
    %14 = vector.broadcast %cst_8 : f32 to vector<16x64xf32>
    %15 = arith.addf %14, %13 : vector<16x64xf32>
    %16 = arith.mulf %10, %15 : vector<16x64xf32>
    %c0_9 = arith.constant 0 : index
    %c0_10 = arith.constant 0 : index
    %17 = vector.load %arg9[%c0_9, %c0_10] : memref<16x32xf32, #tpu.memory_space<vmem>>, vector<16x32xf32>
    %c0_11 = arith.constant 0 : index
    %c0_12 = arith.constant 0 : index
    %18 = vector.load %arg7[%c0_11, %c0_12] : memref<64x32xf32, #tpu.memory_space<vmem>>, vector<64x32xf32>
    %cst_13 = arith.constant dense<0.000000e+00> : vector<16x32xf32>
    %19 = tpu.matmul %16, %18, %cst_13 {dimension_numbers = #tpu.dot_dimension_numbers<[1], [0], [0], [1], [0, 0, 1, 1], [], []>} : vector<16x64xf32>, vector<64x32xf32>, vector<16x32xf32> -> vector<16x32xf32>
    %20 = arith.addf %17, %19 : vector<16x32xf32>
    %c0_14 = arith.constant 0 : index
    %c0_15 = arith.constant 0 : index
    %21 = vector.load %arg9[%c0_14, %c0_15] : memref<16x32xf32, #tpu.memory_space<vmem>>, vector<16x32xf32>
    tpu.vector_store %arg9[%c0_14, %c0_15], %20 {strides = array<i32>} : memref<16x32xf32, #tpu.memory_space<vmem>>, vector<16x32xf32>,
    return
  }
  func.func @transform_0(%arg0: i32, %arg1: i32) -> (i32, i32) {
    %c0_i32 = arith.constant 0 : i32
    %c0_i32_0 = arith.constant 0 : i32
    return %arg0, %c0_i32 : i32, i32
  }
  func.func @transform_1(%arg0: i32, %arg1: i32) -> (i32, i32) {
    %c0_i32 = arith.constant 0 : i32
    %c0_i32_0 = arith.constant 0 : i32
    %c0_i32_1 = arith.constant 0 : i32
    return %c0_i32, %c0_i32_0 : i32, i32
  }
  func.func @transform_2(%arg0: i32, %arg1: i32) -> (i32, i32) {
    %c0_i32 = arith.constant 0 : i32
    %c0_i32_0 = arith.constant 0 : i32
    %c0_i32_1 = arith.constant 0 : i32
    return %c0_i32, %c0_i32_0 : i32, i32
  }
  func.func @transform_3(%arg0: i32, %arg1: i32) -> (i32, i32) {
    %c0_i32 = arith.constant 0 : i32
    %c0_i32_0 = arith.constant 0 : i32
    return %c0_i32, %arg1 : i32, i32
  }
  func.func @transform_4(%arg0: i32, %arg1: i32) -> (i32, i32) {
    %c0_i32 = arith.constant 0 : i32
    %c0_i32_0 = arith.constant 0 : i32
    return %c0_i32, %arg1 : i32, i32
  }
  func.func @transform_5(%arg0: i32, %arg1: i32) -> (i32, i32) {
    %c0_i32 = arith.constant 0 : i32
    %c0_i32_0 = arith.constant 0 : i32
    return %arg1, %c0_i32 : i32, i32
  }
  func.func @transform_6(%arg0: i32, %arg1: i32) -> (i32, i32) {
    %c0_i32 = arith.constant 0 : i32
    %c0_i32_0 = arith.constant 0 : i32
    %c0_i32_1 = arith.constant 0 : i32
    return %c0_i32, %c0_i32_0 : i32, i32
  }
  func.func @transform_7(%arg0: i32, %arg1: i32) -> (i32, i32) {
    %c0_i32 = arith.constant 0 : i32
    %c0_i32_0 = arith.constant 0 : i32
    return %arg0, %c0_i32 : i32, i32
  }
}

</mosaic_0001>

<llo_original>
// kernel: tpu_custom_call.1
$region0: #{tpu_custom_call.1}
  #allocation0 [shape = 'u32[]', space=smem, size = 0x4, offset = 0x4, fixed_abs, tag = 'smem constant byte address 0x4 - core index']
  #allocation1 [shape = 'u32[144,128]{1,0:T(1,128)}', space=vmem, size = 0x12000, scoped, tag = 'internal scratch']
  #allocation2 [shape = 'f32[16,32]{1,0:T(8,128)}', space=vmem, size = 0x2000, scoped, tag = 'scratch operand']
  %s0 = inlined_call_operand.vmem [shape: f32[16,32], index: 0, kind: input, shape index: {}]
  %s1 = inlined_call_operand.vmem [shape: f32[1,32], index: 1, kind: input, shape index: {}]
  %s2 = inlined_call_operand.vmem [shape: f32[1,32], index: 2, kind: input, shape index: {}]
  %s3 = inlined_call_operand.vmem [shape: f32[32,64], index: 3, kind: input, shape index: {}]
  %s4 = inlined_call_operand.vmem [shape: f32[1,64], index: 4, kind: input, shape index: {}]
  %s5 = inlined_call_operand.vmem [shape: f32[64,32], index: 5, kind: input, shape index: {}]
  %s6 = inlined_call_operand.vmem [shape: f32[1,32], index: 6, kind: input, shape index: {}]
  %s7 = inlined_call_operand.hbm [shape: f32[16,32], index: 7, kind: output, shape index: {}]
  %s8 = sld [smem:[#allocation0]]
  $region42: #{tpu_custom_call.1} parent=0
    _
  %s10 = ssub.s32 1, %s8
  %s11 = scalar_select 0, %s10, %s8
  $region1: #{tpu_custom_call.1} parent=0
    #allocation3 [shape = 'u8[8192]{0}', space=vmem, size = 0x2000, scoped, tag = 'output window, operand 0, single buffered']
    #allocation4 [shape = 's32[1]{0}', space=sflag, size = 0x4, scoped, tag = 'scoped memory for tpu_custom_call.1']
    %12 = vsyncpa [#allocation4], 0
    // Predicated region
    $region2: #{tpu_custom_call.1} parent=1 // pred_check
      _
    $region3: #{tpu_custom_call.1} parent=1 // pred_check_branch
      %14 = sbr.rel (0) target = $region5
    $region4: #{tpu_custom_call.1} parent=1 // pred_region
      _
    $region5: #{tpu_custom_call.1} parent=1 // pred_fallthru
      _
    // Predicated region
    $region6: #{tpu_custom_call.1} parent=1 // pred_check
      _
    $region7: #{tpu_custom_call.1} parent=1 // pred_check_branch
      %16 = sbr.rel (0) target = $region9
    $region8: #{tpu_custom_call.1} parent=1 // pred_region
      _
    $region9: #{tpu_custom_call.1} parent=1 // pred_fallthru
      _
    // Predicated region
    $region10: #{tpu_custom_call.1} parent=1 // pred_check
      _
    $region11: #{tpu_custom_call.1} parent=1 // pred_check_branch
      %18 = sbr.rel (0) target = $region13
    $region12: #{tpu_custom_call.1} parent=1 // pred_region
      _
    $region13: #{tpu_custom_call.1} parent=1 // pred_fallthru
      _
    // Predicated region
    $region14: #{tpu_custom_call.1} parent=1 // pred_check
      _
    $region15: #{tpu_custom_call.1} parent=1 // pred_check_branch
      %20 = sbr.rel (0) target = $region17
    $region16: #{tpu_custom_call.1} parent=1 // pred_region
      _
    $region17: #{tpu_custom_call.1} parent=1 // pred_fallthru
      _
    // Predicated region
    $region18: #{tpu_custom_call.1} parent=1 // pred_check
      _
    $region19: #{tpu_custom_call.1} parent=1 // pred_check_branch
      %22 = sbr.rel (0) target = $region21
    $region20: #{tpu_custom_call.1} parent=1 // pred_region
      _
    $region21: #{tpu_custom_call.1} parent=1 // pred_fallthru
      _
    // Predicated region
    $region22: #{tpu_custom_call.1} parent=1 // pred_check
      _
    $region23: #{tpu_custom_call.1} parent=1 // pred_check_branch
      %24 = sbr.rel (0) target = $region25
    $region24: #{tpu_custom_call.1} parent=1 // pred_region
      _
    $region25: #{tpu_custom_call.1} parent=1 // pred_fallthru
      _
    // Predicated region
    $region26: #{tpu_custom_call.1} parent=1 // pred_check
      _
    $region27: #{tpu_custom_call.1} parent=1 // pred_check_branch
      %26 = sbr.rel (0) target = $region29
    $region28: #{tpu_custom_call.1} parent=1 // pred_region
      _
    $region29: #{tpu_custom_call.1} parent=1 // pred_fallthru
      _
    %p27 = scmp.eq.s32.totalorder 0, 0
    // Predicated region
    $region30: #{tpu_custom_call.1} parent=1 // pred_check
      %p28 = pneg %p27
    $region31: #{tpu_custom_call.1} parent=1 // pred_check_branch
      %30 = sbr.rel (%p28) target = $region33
    $region32: #{tpu_custom_call.1} parent=1 // pred_region
      %v31 = vld [vmem:[%s0] sm:$0xff]
      %v32 = vld [vmem:[%s0 + $0x8] sm:$0xff]
      %vm33 = vcmask 261120
      %v34 = vsel %vm33, %v31, 0.0
      %35 = vadd.xlane.f32.xlu0 %v34
      %v36 = vpop.xlane.xlu0 %35
      %v37 = vsel %vm33, %v32, 0.0
      %38 = vadd.xlane.f32.xlu0 %v37
      %v39 = vpop.xlane.xlu0 %38
      %v40 = vmul.f32 %v36, 0.03125
      %v41 = vmul.f32 %v39, 0.03125
      %v42 = vsub.f32 %v31, %v40
      %v43 = vsub.f32 %v32, %v41
      %v44 = vmul.f32 %v42, %v42
      %v45 = vmul.f32 %v43, %v43
      %v46 = vsel %vm33, %v44, 0.0
      %47 = vadd.xlane.f32.xlu0 %v46
      %v48 = vpop.xlane.xlu0 %47
      %v49 = vsel %vm33, %v45, 0.0
      %50 = vadd.xlane.f32.xlu0 %v49
      %v51 = vpop.xlane.xlu0 %50
      %v52 = vmul.f32 %v48, 0.03125
      %v53 = vmul.f32 %v51, 0.03125
      %v54 = vadd.f32 %v52, 1e-05
      %v55 = vadd.f32 %v53, 1e-05
      %v56 = vrsqrt.pop %v54
      %v57 = vrsqrt.pop %v55
      %v58 = vmul.f32 %v42, %v56
      %v59 = vmul.f32 %v43, %v57
      %v60 = vld [vmem:[%s1] sm:$0x1]
      %v62 = vlaneseq
      %v63 = vshrl.u32 %v62, 7
      %v64 = vsub.s32 0, %v63
      %v65 = vrot.slane %v60, %v64
      %v67 = vmul.f32 %v58, %v65
      %v68 = vmul.f32 %v59, %v65
      %v69 = vld [vmem:[%s2] sm:$0x1]
      %v71 = vlaneseq
      %v72 = vshrl.u32 %v71, 7
      %v73 = vsub.s32 0, %v72
      %v74 = vrot.slane %v69, %v73
      %v76 = vadd.f32 %v67, %v74
      %v77 = vadd.f32 %v68, %v74
      %78 = vst.msk [vmem:[#allocation2] sm:$0xff] %vm33, %v76
      %79 = vst.msk [vmem:[#allocation2 + $0x8] sm:$0xff] %vm33, %v77
      %v80 = vld [vmem:[%s6] sm:$0x1]
      %v82 = vlaneseq
      %v83 = vshrl.u32 %v82, 7
      %v84 = vsub.s32 0, %v83
      %v85 = vrot.slane %v80, %v84
      %87 = vst.msk [vmem:[#allocation3] sm:$0xff] %vm33, %v85
      %88 = vst.msk [vmem:[#allocation3 + $0x8] sm:$0xff] %vm33, %v85
    $region33: #{tpu_custom_call.1} parent=1 // pred_fallthru
      _
    %v89 = vld [vmem:[#allocation2] sm:$0xff]
    %v90 = vld [vmem:[#allocation2 + $0x8] sm:$0xff]
    %v91 = vld [vmem:[%s3] sm:$0xff]
    %v92 = vld [vmem:[%s3 + $0x8] sm:$0xff]
    %v93 = vld [vmem:[%s3 + $0x10] sm:$0xff]
    %v94 = vld [vmem:[%s3 + $0x18] sm:$0xff]
    %v95 = vld [vmem:[%s4] sm:$0x1]
    %v97 = vlaneseq
    %v98 = vshrl.u32 %v97, 7
    %v99 = vsub.s32 0, %v98
    %v100 = vrot.slane %v95, %v99
    %vm102 = vcmask 261120
    %v104 = vsel %vm102, %v89, 0
    %v107 = vsel %vm102, %v90, 0
    %109 = vmatprep.subr.mxu0 0.0
    %110 = vmatpush1.msra.mxu0 0.0
    %111 = vmatprep.subr.mxu0 0.0
    %112 = vmatpush1.msra.mxu0 0.0
    %113 = vmatprep.subr.mxu0 0.0
    %114 = vmatpush1.msra.mxu0 0.0
    %115 = vmatprep.subr.mxu0 0.0
    %116 = vmatpush1.msra.mxu0 0.0
    %117 = vmatprep.subr.mxu0 0.0
    %118 = vmatpush1.msra.mxu0 0.0
    %119 = vmatprep.subr.mxu0 0.0
    %120 = vmatpush1.msra.mxu0 0.0
    %121 = vmatprep.subr.mxu0 0.0
    %122 = vmatpush1.msra.mxu0 0.0
    %123 = vmatprep.subr.mxu0 0.0
    %124 = vmatpush1.msra.mxu0 0.0
    %125 = vmatprep.subr.mxu0 0.0
    %126 = vmatpush1.msra.mxu0 0.0
    %127 = vmatprep.subr.mxu0 0.0
    %128 = vmatpush1.msra.mxu0 0.0
    %129 = vmatprep.subr.mxu0 0.0
    %130 = vmatpush1.msra.mxu0 0.0
    %131 = vmatprep.subr.mxu0 0.0
    %132 = vmatpush1.msra.mxu0 0.0
    %133 = vmatprep.subr.mxu0 0.0
    %134 = vmatpush1.msra.mxu0 %v94
    %135 = vmatprep.subr.mxu0 0.0
    %136 = vmatpush1.msra.mxu0 %v93
    %137 = vmatprep.subr.mxu0 0.0
    %138 = vmatpush1.msra.mxu0 %v92
    %139 = vmatprep.subr.mxu0 0.0
    %140 = vmatpush1.msra.mxu0 %v91
    %141 = vmatprep.subr.mxu0 0.0
    %142 = vmatpush2.msra.mxu0 0.0
    %143 = vmatprep.subr.mxu0 0.0
    %144 = vmatpush2.msra.mxu0 0.0
    %145 = vmatprep.subr.mxu0 0.0
    %146 = vmatpush2.msra.mxu0 0.0
    %147 = vmatprep.subr.mxu0 0.0
    %148 = vmatpush2.msra.mxu0 0.0
    %149 = vmatprep.subr.mxu0 0.0
    %150 = vmatpush2.msra.mxu0 0.0
    %151 = vmatprep.subr.mxu0 0.0
    %152 = vmatpush2.msra.mxu0 0.0
    %153 = vmatprep.subr.mxu0 0.0
    %154 = vmatpush2.msra.mxu0 0.0
    %155 = vmatprep.subr.mxu0 0.0
    %156 = vmatpush2.msra.mxu0 0.0
    %157 = vmatprep.subr.mxu0 0.0
    %158 = vmatpush2.msra.mxu0 0.0
    %159 = vmatprep.subr.mxu0 0.0
    %160 = vmatpush2.msra.mxu0 0.0
    %161 = vmatprep.subr.mxu0 0.0
    %162 = vmatpush2.msra.mxu0 0.0
    %163 = vmatprep.subr.mxu0 0.0
    %164 = vmatpush2.msra.mxu0 0.0
    %165 = vmatprep.subr.mxu0 0.0
    %166 = vmatpush2.msra.mxu0 0.0
    %167 = vmatprep.subr.mxu0 0.0
    %168 = vmatpush2.msra.mxu0 0.0
    %169 = vmatprep.subr.mxu0 0.0
    %170 = vmatpush2.msra.mxu0 0.0
    %171 = vmatprep.subr.mxu0 0.0
    %172 = vmatpush2.msra.mxu0 0.0
    %173 = vmatprep.mubr.f32.mxu0 0.0
    %174 = vmatmul.mubr.f32.gmra.mxu0 %v104
    %v175 = vpop.f32.mrf.mxu0
    %v176 = vadd.f32 %v100, %v175
    %v177 = vpop.f32.mrf.mxu0
    %178 = vmatprep.mubr.f32.mxu0 0.0
    %179 = vmatmul.mubr.f32.gmra.mxu0 %v107
    %v180 = vpop.f32.mrf.mxu0
    %v181 = vadd.f32 %v100, %v180
    %v182 = vpop.f32.mrf.mxu0
    %183 = vdwg.mxu0
    %v184 = vmul.f32 %v176, 0.5
    %v185 = vmul.f32 %v181, 0.5
    %v186 = vmul.f32 %v176, 0.70710677
    %v187 = vmul.f32 %v181, 0.70710677
    %v188 = verf.f32.pop %v186
    %v189 = verf.f32.pop %v187
    %v190 = vadd.f32 %v188, 1.0
    %v191 = vadd.f32 %v189, 1.0
    %v192 = vmul.f32 %v184, %v190
    %v193 = vmul.f32 %v185, %v191
    %v194 = vld [vmem:[#allocation3] sm:$0xff]
    %v195 = vld [vmem:[#allocation3 + $0x8] sm:$0xff]
    %v196 = vld [vmem:[%s5] sm:$0xff]
    %v197 = vld [vmem:[%s5 + $0x8] sm:$0xff]
    %v198 = vld [vmem:[%s5 + $0x10] sm:$0xff]
    %v199 = vld [vmem:[%s5 + $0x18] sm:$0xff]
    %v200 = vld [vmem:[%s5 + $0x20] sm:$0xff]
    %v201 = vld [vmem:[%s5 + $0x28] sm:$0xff]
    %v202 = vld [vmem:[%s5 + $0x30] sm:$0xff]
    %v203 = vld [vmem:[%s5 + $0x38] sm:$0xff]
    %vm204 = vcmask 523264
    %v206 = vsel %vm204, %v192, 0
    %v209 = vsel %vm204, %v193, 0
    %211 = vmatprep.subr.mxu0 0.0
    %212 = vmatpush1.msra.mxu0 0.0
    %213 = vmatprep.subr.mxu0 0.0
    %214 = vmatpush1.msra.mxu0 0.0
    %215 = vmatprep.subr.mxu0 0.0
    %216 = vmatpush1.msra.mxu0 0.0
    %217 = vmatprep.subr.mxu0 0.0
    %218 = vmatpush1.msra.mxu0 0.0
    %219 = vmatprep.subr.mxu0 0.0
    %220 = vmatpush1.msra.mxu0 0.0
    %221 = vmatprep.subr.mxu0 0.0
    %222 = vmatpush1.msra.mxu0 0.0
    %223 = vmatprep.subr.mxu0 0.0
    %224 = vmatpush1.msra.mxu0 0.0
    %225 = vmatprep.subr.mxu0 0.0
    %226 = vmatpush1.msra.mxu0 0.0
    %227 = vmatprep.subr.mxu0 0.0
    %228 = vmatpush1.msra.mxu0 %v203
    %229 = vmatprep.subr.mxu0 0.0
    %230 = vmatpush1.msra.mxu0 %v202
    %231 = vmatprep.subr.mxu0 0.0
    %232 = vmatpush1.msra.mxu0 %v201
    %233 = vmatprep.subr.mxu0 0.0
    %234 = vmatpush1.msra.mxu0 %v200
    %235 = vmatprep.subr.mxu0 0.0
    %236 = vmatpush1.msra.mxu0 %v199
    %237 = vmatprep.subr.mxu0 0.0
    %238 = vmatpush1.msra.mxu0 %v198
    %239 = vmatprep.subr.mxu0 0.0
    %240 = vmatpush1.msra.mxu0 %v197
    %241 = vmatprep.subr.mxu0 0.0
    %242 = vmatpush1.msra.mxu0 %v196
    %243 = vmatprep.subr.mxu0 0.0
    %244 = vmatpush2.msra.mxu0 0.0
    %245 = vmatprep.subr.mxu0 0.0
    %246 = vmatpush2.msra.mxu0 0.0
    %247 = vmatprep.subr.mxu0 0.0
    %248 = vmatpush2.msra.mxu0 0.0
    %249 = vmatprep.subr.mxu0 0.0
    %250 = vmatpush2.msra.mxu0 0.0
    %251 = vmatprep.subr.mxu0 0.0
    %252 = vmatpush2.msra.mxu0 0.0
    %253 = vmatprep.subr.mxu0 0.0
    %254 = vmatpush2.msra.mxu0 0.0
    %255 = vmatprep.subr.mxu0 0.0
    %256 = vmatpush2.msra.mxu0 0.0
    %257 = vmatprep.subr.mxu0 0.0
    %258 = vmatpush2.msra.mxu0 0.0
    %259 = vmatprep.subr.mxu0 0.0
    %260 = vmatpush2.msra.mxu0 0.0
    %261 = vmatprep.subr.mxu0 0.0
    %262 = vmatpush2.msra.mxu0 0.0
    %263 = vmatprep.subr.mxu0 0.0
    %264 = vmatpush2.msra.mxu0 0.0
    %265 = vmatprep.subr.mxu0 0.0
    %266 = vmatpush2.msra.mxu0 0.0
    %267 = vmatprep.subr.mxu0 0.0
    %268 = vmatpush2.msra.mxu0 0.0
    %269 = vmatprep.subr.mxu0 0.0
    %270 = vmatpush2.msra.mxu0 0.0
    %271 = vmatprep.subr.mxu0 0.0
    %272 = vmatpush2.msra.mxu0 0.0
    %273 = vmatprep.subr.mxu0 0.0
    %274 = vmatpush2.msra.mxu0 0.0
    %275 = vmatprep.mubr.f32.mxu0 0.0
    %276 = vmatmul.mubr.f32.gmra.mxu0 %v206
    %v277 = vpop.f32.mrf.mxu0
    %v278 = vadd.f32 0.0, %v277
    %v279 = vpop.f32.mrf.mxu0
    %280 = vmatprep.mubr.f32.mxu0 0.0
    %281 = vmatmul.mubr.f32.gmra.mxu0 %v209
    %v282 = vpop.f32.mrf.mxu0
    %v283 = vadd.f32 0.0, %v282
    %v284 = vpop.f32.mrf.mxu0
    %285 = vdwg.mxu0
    %v286 = vadd.f32 %v194, %v278
    %v287 = vadd.f32 %v195, %v283
    %288 = vst.msk [vmem:[#allocation3] sm:$0xff] %vm102, %v286
    %289 = vst.msk [vmem:[#allocation3 + $0x8] sm:$0xff] %vm102, %v287
    // Predicated region
    $region34: #{tpu_custom_call.1} parent=1 // pred_check
      _
    $region35: #{tpu_custom_call.1} parent=1 // pred_check_branch
      %291 = sbr.rel (0) target = $region37
    $region36: #{tpu_custom_call.1} parent=1 // pred_region
      %s293 = ssub.s32 256, 256
      %294 = vsyncadd [#allocation4], %s293
      %s295 = sshll.u32 [#allocation3], 4
      %s296 = int_to_ptr.vmem [resolvable:$true] %s295
      %301 = dma.vmem_to_hbm [thread:$0]  %s296, 256, %s7, [#allocation4], 128, 128, 8
    $region37: #{tpu_custom_call.1} parent=1 // pred_fallthru
      _
    // Predicated region
    $region38: #{tpu_custom_call.1} parent=1 // pred_check
      _
    $region39: #{tpu_custom_call.1} parent=1 // pred_check_branch
      %303 = sbr.rel (0) target = $region41
    $region40: #{tpu_custom_call.1} parent=1 // pred_region
      %304 = dma.done [#allocation4], 256
    $region41: #{tpu_custom_call.1} parent=1 // pred_fallthru
      _
    %305 = vsyncpa [#allocation4], 1

</llo_original>
